<compile_context>
chip_gen: v5e
topology: v5e:2x2
jax: 0.10.0
libtpu: 0.0.40
codegen_flags: <defaults>
</compile_context>

<pallas_src>
import jax
import jax.numpy as jnp
from jax.experimental import pallas as pl
from jax.experimental.pallas import tpu as pltpu

INPUT_SIZE = 7
HIDDEN_SIZE = 49
OUTPUT_SIZE = 42

# Padded sizes for MXU-friendly contractions.
IN_PAD = 8        # sublane-friendly contraction dim for layer 1
HID_PAD = 128     # one full lane tile for hidden activations / contractions
# Output feature dim is left UNPADDED (42): full-extent last dim in the out
# BlockSpec is legal, and it cuts HBM write traffic ~3x vs padding to 128.


def _round_up(n, m):
    return ((n + m - 1) // m) * m


def _pad2d(a, shape):
    """Zero-pad a 2-D array up to `shape` (trailing pad only)."""
    return jnp.pad(a, [(0, s - d) for s, d in zip(shape, a.shape)])


def mlp_kernel(x_ref, w1_ref, b1_ref, w2_ref, b2_ref, w3_ref, b3_ref, o_ref):
    # One batch tile per grid step; weights/biases are VMEM-resident across steps.
    # Matmul inputs are bf16, accumulation is f32; bias add / ReLU in f32.
    x = x_ref[...]  # bf16 (tb, IN_PAD)

    h1 = jnp.dot(x, w1_ref[...], preferred_element_type=jnp.float32) + b1_ref[...]
    h1 = jnp.maximum(h1, 0.0).astype(jnp.bfloat16)   # ReLU; padded lanes stay 0

    h2 = jnp.dot(h1, w2_ref[...], preferred_element_type=jnp.float32) + b2_ref[...]
    h2 = jnp.maximum(h2, 0.0).astype(jnp.bfloat16)   # ReLU

    out = jnp.dot(h2, w3_ref[...], preferred_element_type=jnp.float32) + b3_ref[...]
    o_ref[...] = out.astype(o_ref.dtype)             # (tb, 42) narrow store


def mlp_forward(x, params, *, block_rows=1024):
    """x: [B, INPUT_SIZE] float32; params: dict from init_params (unpadded, f32)."""
    B = x.shape[0]
    assert x.shape[1] == INPUT_SIZE, x.shape

    # Tile selection: at least 2 grid steps when possible (v7x megacore), tiles
    # capped near block_rows, and sized to minimize batch padding.
    n_tiles = max(pl.cdiv(B, block_rows), 2)
    tb = max(_round_up(pl.cdiv(B, n_tiles), 8), 8)
    Bp = _round_up(B, tb)

    # Zero-padded operands.  Padded weight rows/cols and bias entries are 0 and
    # ReLU(0) == 0, so padded hidden lanes stay exactly zero; padded batch rows
    # are sliced off at the end.
    xp = _pad2d(x, (Bp, IN_PAD)).astype(jnp.bfloat16)
    w1 = _pad2d(params["w1"], (IN_PAD, HID_PAD)).astype(jnp.bfloat16)
    b1 = _pad2d(params["b1"], (1, HID_PAD))                       # f32
    w2 = _pad2d(params["w2"], (HID_PAD, HID_PAD)).astype(jnp.bfloat16)
    b2 = _pad2d(params["b2"], (1, HID_PAD))                       # f32
    w3 = _pad2d(params["w3"], (HID_PAD, OUTPUT_SIZE)).astype(jnp.bfloat16)
    b3 = params["b3"]                                             # (1, 42) f32

    grid = (Bp // tb,)
    resident = lambda a: pl.BlockSpec(a.shape, lambda i: (0, 0))  # stays in VMEM

    # Only raise the scoped-VMEM limit if tiles are pushed past ~4K rows
    # (relevant to v5e's 16 MiB default); default tiles need ~2 MB total.
    vmem_limit = 48 * 1024 * 1024 if tb > 4096 else None

    out = pl.pallas_call(
        mlp_kernel,
        out_shape=jax.ShapeDtypeStruct((Bp, OUTPUT_SIZE), x.dtype),
        grid=grid,
        in_specs=[
            pl.BlockSpec((tb, IN_PAD), lambda i: (i, 0)),   # x: pipelined over batch
            resident(w1), resident(b1),
            resident(w2), resident(b2),
            resident(w3), resident(b3),
        ],
        out_specs=pl.BlockSpec((tb, OUTPUT_SIZE), lambda i: (i, 0)),
        compiler_params=pltpu.CompilerParams(
            dimension_semantics=("parallel",),  # batch tiles are independent
            vmem_limit_bytes=vmem_limit),
    )(xp, w1, b1, w2, b2, w3, b3)

    return out if Bp == B else out[:B]


def init_params(key):
    """Deterministic init matching torch nn.Linear default (uniform ±1/sqrt(fan_in)).

    Weights stored as [in_features, out_features]; biases as [1, out_features].
    """
    ks = jax.random.split(key, 6)

    def linear(kw, kb, fan_in, fan_out):
        bound = 1.0 / jnp.sqrt(fan_in)
        w = jax.random.uniform(kw, (fan_in, fan_out), jnp.float32, -bound, bound)
        b = jax.random.uniform(kb, (1, fan_out), jnp.float32, -bound, bound)
        return w, b

    w1, b1 = linear(ks[0], ks[1], INPUT_SIZE, HIDDEN_SIZE)
    w2, b2 = linear(ks[2], ks[3], HIDDEN_SIZE, HIDDEN_SIZE)
    w3, b3 = linear(ks[4], ks[5], HIDDEN_SIZE, OUTPUT_SIZE)
    return {"w1": w1, "b1": b1, "w2": w2, "b2": b2, "w3": w3, "b3": b3}


def mlp_reference(x, params):
    h1 = jnp.maximum(x @ params["w1"] + params["b1"], 0.0)
    h2 = jnp.maximum(h1 @ params["w2"] + params["b2"], 0.0)
    return h2 @ params["w3"] + params["b3"]


if __name__ == "__main__":
    key = jax.random.PRNGKey(0)
    k_param, k_x = jax.random.split(key)

    params = init_params(k_param)
    batch = 8
    x = jax.random.normal(k_x, (batch, INPUT_SIZE), jnp.float32)

    out = jax.block_until_ready(mlp_forward(x, params))
    ref = mlp_reference(x, params)
    assert out.shape == (batch, OUTPUT_SIZE), out.shape
    # bf16 matmul inputs with f32 accumulation -> loosened tolerance.
    assert jnp.allclose(out, ref, atol=3e-2, rtol=3e-2), "mismatch vs reference"

    # Multi-tile / pipelined path (2 grid steps, ragged batch -> minimal padding).
    xb = jax.random.normal(k_x, (600, INPUT_SIZE), jnp.float32)
    outb = jax.block_until_ready(mlp_forward(xb, params))
    refb = mlp_reference(xb, params)
    assert outb.shape == (600, OUTPUT_SIZE), outb.shape
    assert jnp.allclose(outb, refb, atol=3e-2, rtol=3e-2), "mismatch (large batch)"

    print("KERNEL_OK")
</pallas_src>

<mosaic_0001>
module attributes {stable_mosaic.version = 11 : i64} {
  func.func @mlp_kernel(%arg0: i32, %arg1: memref<8x8xbf16, #tpu.memory_space<vmem>>, %arg2: memref<8x128xbf16, #tpu.memory_space<vmem>>, %arg3: memref<1x128xf32, #tpu.memory_space<vmem>>, %arg4: memref<128x128xbf16, #tpu.memory_space<vmem>>, %arg5: memref<1x128xf32, #tpu.memory_space<vmem>>, %arg6: memref<128x42xbf16, #tpu.memory_space<vmem>>, %arg7: memref<1x42xf32, #tpu.memory_space<vmem>>, %arg8: memref<8x42xf32, #tpu.memory_space<vmem>>) attributes {dimension_semantics = [#tpu.dimension_semantics<parallel>], iteration_bounds = array<i64: 1>, scalar_prefetch = 0 : i64, scratch_operands = 0 : i64, tpu.core_type = #tpu.core_type<tc>, window_params = [{transform_indices = @transform_0, window_bounds = array<i64: 8, 8>}, {pipeline_mode = #tpu.pipeline_mode<synchronous>, transform_indices = @transform_1, window_bounds = array<i64: 8, 128>}, {pipeline_mode = #tpu.pipeline_mode<synchronous>, transform_indices = @transform_2, window_bounds = array<i64: 1, 128>}, {pipeline_mode = #tpu.pipeline_mode<synchronous>, transform_indices = @transform_3, window_bounds = array<i64: 128, 128>}, {pipeline_mode = #tpu.pipeline_mode<synchronous>, transform_indices = @transform_4, window_bounds = array<i64: 1, 128>}, {pipeline_mode = #tpu.pipeline_mode<synchronous>, transform_indices = @transform_5, window_bounds = array<i64: 128, 42>}, {pipeline_mode = #tpu.pipeline_mode<synchronous>, transform_indices = @transform_6, window_bounds = array<i64: 1, 42>}, {transform_indices = @transform_7, window_bounds = array<i64: 8, 42>}]} {
    %c0 = arith.constant 0 : index
    %c0_0 = arith.constant 0 : index
    %0 = vector.load %arg1[%c0, %c0_0] : memref<8x8xbf16, #tpu.memory_space<vmem>>, vector<8x8xbf16>
    %c0_1 = arith.constant 0 : index
    %c0_2 = arith.constant 0 : index
    %1 = vector.load %arg2[%c0_1, %c0_2] : memref<8x128xbf16, #tpu.memory_space<vmem>>, vector<8x128xbf16>
    %cst = arith.constant dense<0.000000e+00> : vector<8x128xf32>
    %2 = tpu.matmul %0, %1, %cst {dimension_numbers = #tpu.dot_dimension_numbers<[1], [0], [0], [1], [0, 0, 1, 1], [], []>} : vector<8x8xbf16>, vector<8x128xbf16>, vector<8x128xf32> -> vector<8x128xf32>
    %c0_3 = arith.constant 0 : index
    %c0_4 = arith.constant 0 : index
    %3 = vector.load %arg3[%c0_3, %c0_4] : memref<1x128xf32, #tpu.memory_space<vmem>>, vector<1x128xf32>
    %4 = vector.broadcast %3 : vector<1x128xf32> to vector<8x128xf32>
    %5 = arith.addf %2, %4 : vector<8x128xf32>
    %cst_5 = arith.constant 0.000000e+00 : f32
    %6 = vector.broadcast %cst_5 : f32 to vector<8x128xf32>
    %7 = arith.maximumf %5, %6 : vector<8x128xf32>
    %8 = arith.truncf %7 : vector<8x128xf32> to vector<8x128xbf16>
    %c0_6 = arith.constant 0 : index
    %c0_7 = arith.constant 0 : index
    %9 = vector.load %arg4[%c0_6, %c0_7] : memref<128x128xbf16, #tpu.memory_space<vmem>>, vector<128x128xbf16>
    %cst_8 = arith.constant dense<0.000000e+00> : vector<8x128xf32>
    %10 = tpu.matmul %8, %9, %cst_8 {dimension_numbers = #tpu.dot_dimension_numbers<[1], [0], [0], [1], [0, 0, 1, 1], [], []>} : vector<8x128xbf16>, vector<128x128xbf16>, vector<8x128xf32> -> vector<8x128xf32>
    %c0_9 = arith.constant 0 : index
    %c0_10 = arith.constant 0 : index
    %11 = vector.load %arg5[%c0_9, %c0_10] : memref<1x128xf32, #tpu.memory_space<vmem>>, vector<1x128xf32>
    %12 = vector.broadcast %11 : vector<1x128xf32> to vector<8x128xf32>
    %13 = arith.addf %10, %12 : vector<8x128xf32>
    %cst_11 = arith.constant 0.000000e+00 : f32
    %14 = vector.broadcast %cst_11 : f32 to vector<8x128xf32>
    %15 = arith.maximumf %13, %14 : vector<8x128xf32>
    %16 = arith.truncf %15 : vector<8x128xf32> to vector<8x128xbf16>
    %c0_12 = arith.constant 0 : index
    %c0_13 = arith.constant 0 : index
    %17 = vector.load %arg6[%c0_12, %c0_13] : memref<128x42xbf16, #tpu.memory_space<vmem>>, vector<128x42xbf16>
    %cst_14 = arith.constant dense<0.000000e+00> : vector<8x42xf32>
    %18 = tpu.matmul %16, %17, %cst_14 {dimension_numbers = #tpu.dot_dimension_numbers<[1], [0], [0], [1], [0, 0, 1, 1], [], []>} : vector<8x128xbf16>, vector<128x42xbf16>, vector<8x42xf32> -> vector<8x42xf32>
    %c0_15 = arith.constant 0 : index
    %c0_16 = arith.constant 0 : index
    %19 = vector.load %arg7[%c0_15, %c0_16] : memref<1x42xf32, #tpu.memory_space<vmem>>, vector<1x42xf32>
    %20 = vector.broadcast %19 : vector<1x42xf32> to vector<8x42xf32>
    %21 = arith.addf %18, %20 : vector<8x42xf32>
    %c0_17 = arith.constant 0 : index
    %c0_18 = arith.constant 0 : index
    %22 = vector.load %arg8[%c0_17, %c0_18] : memref<8x42xf32, #tpu.memory_space<vmem>>, vector<8x42xf32>
    tpu.vector_store %arg8[%c0_17, %c0_18], %21 {strides = array<i32>} : memref<8x42xf32, #tpu.memory_space<vmem>>, vector<8x42xf32>,
    return
  }
  func.func @transform_0(%arg0: i32) -> (i32, i32) {
    %c0_i32 = arith.constant 0 : i32
    %c0_i32_0 = arith.constant 0 : i32
    return %arg0, %c0_i32 : i32, i32
  }
  func.func @transform_1(%arg0: i32) -> (i32, i32) {
    %c0_i32 = arith.constant 0 : i32
    %c0_i32_0 = arith.constant 0 : i32
    %c0_i32_1 = arith.constant 0 : i32
    return %c0_i32, %c0_i32_0 : i32, i32
  }
  func.func @transform_2(%arg0: i32) -> (i32, i32) {
    %c0_i32 = arith.constant 0 : i32
    %c0_i32_0 = arith.constant 0 : i32
    %c0_i32_1 = arith.constant 0 : i32
    return %c0_i32, %c0_i32_0 : i32, i32
  }
  func.func @transform_3(%arg0: i32) -> (i32, i32) {
    %c0_i32 = arith.constant 0 : i32
    %c0_i32_0 = arith.constant 0 : i32
    %c0_i32_1 = arith.constant 0 : i32
    return %c0_i32, %c0_i32_0 : i32, i32
  }
  func.func @transform_4(%arg0: i32) -> (i32, i32) {
    %c0_i32 = arith.constant 0 : i32
    %c0_i32_0 = arith.constant 0 : i32
    %c0_i32_1 = arith.constant 0 : i32
    return %c0_i32, %c0_i32_0 : i32, i32
  }
  func.func @transform_5(%arg0: i32) -> (i32, i32) {
    %c0_i32 = arith.constant 0 : i32
    %c0_i32_0 = arith.constant 0 : i32
    %c0_i32_1 = arith.constant 0 : i32
    return %c0_i32, %c0_i32_0 : i32, i32
  }
  func.func @transform_6(%arg0: i32) -> (i32, i32) {
    %c0_i32 = arith.constant 0 : i32
    %c0_i32_0 = arith.constant 0 : i32
    %c0_i32_1 = arith.constant 0 : i32
    return %c0_i32, %c0_i32_0 : i32, i32
  }
  func.func @transform_7(%arg0: i32) -> (i32, i32) {
    %c0_i32 = arith.constant 0 : i32
    %c0_i32_0 = arith.constant 0 : i32
    return %arg0, %c0_i32 : i32, i32
  }
}

</mosaic_0001>

<llo_original>
// kernel: tpu_custom_call.1
$region0: #{tpu_custom_call.1}
  #allocation0 [shape = 'u32[]', space=smem, size = 0x4, offset = 0x4, fixed_abs, tag = 'smem constant byte address 0x4 - core index']
  #allocation1 [shape = 'u32[72,128]{1,0:T(1,128)}', space=vmem, size = 0x9000, scoped, tag = 'internal scratch']
  %s0 = inlined_call_operand.vmem [shape: bf16[8,8], index: 0, kind: input, shape index: {}]
  %s1 = inlined_call_operand.vmem [shape: bf16[8,128], index: 1, kind: input, shape index: {}]
  %s2 = inlined_call_operand.vmem [shape: f32[1,128], index: 2, kind: input, shape index: {}]
  %s3 = inlined_call_operand.vmem [shape: bf16[128,128], index: 3, kind: input, shape index: {}]
  %s4 = inlined_call_operand.vmem [shape: f32[1,128], index: 4, kind: input, shape index: {}]
  %s5 = inlined_call_operand.vmem [shape: bf16[128,42], index: 5, kind: input, shape index: {}]
  %s6 = inlined_call_operand.vmem [shape: f32[1,42], index: 6, kind: input, shape index: {}]
  %s7 = inlined_call_operand.hbm [shape: f32[8,42], index: 7, kind: output, shape index: {}]
  %s8 = sld [smem:[#allocation0]]
  $region38: #{tpu_custom_call.1} parent=0
    _
  %s10 = ssub.s32 1, %s8
  %s11 = scalar_select 0, %s10, %s8
  $region1: #{tpu_custom_call.1} parent=0
    #allocation2 [shape = 'u8[4096]{0}', space=vmem, size = 0x1000, scoped, tag = 'output window, operand 0, single buffered']
    #allocation3 [shape = 's32[1]{0}', space=sflag, size = 0x4, scoped, tag = 'scoped memory for tpu_custom_call.1']
    %12 = vsyncpa [#allocation3], 0
    // Predicated region
    $region2: #{tpu_custom_call.1} parent=1 // pred_check
      _
    $region3: #{tpu_custom_call.1} parent=1 // pred_check_branch
      %14 = sbr.rel (0) target = $region5
    $region4: #{tpu_custom_call.1} parent=1 // pred_region
      _
    $region5: #{tpu_custom_call.1} parent=1 // pred_fallthru
      _
    // Predicated region
    $region6: #{tpu_custom_call.1} parent=1 // pred_check
      _
    $region7: #{tpu_custom_call.1} parent=1 // pred_check_branch
      %16 = sbr.rel (0) target = $region9
    $region8: #{tpu_custom_call.1} parent=1 // pred_region
      _
    $region9: #{tpu_custom_call.1} parent=1 // pred_fallthru
      _
    // Predicated region
    $region10: #{tpu_custom_call.1} parent=1 // pred_check
      _
    $region11: #{tpu_custom_call.1} parent=1 // pred_check_branch
      %18 = sbr.rel (0) target = $region13
    $region12: #{tpu_custom_call.1} parent=1 // pred_region
      _
    $region13: #{tpu_custom_call.1} parent=1 // pred_fallthru
      _
    // Predicated region
    $region14: #{tpu_custom_call.1} parent=1 // pred_check
      _
    $region15: #{tpu_custom_call.1} parent=1 // pred_check_branch
      %20 = sbr.rel (0) target = $region17
    $region16: #{tpu_custom_call.1} parent=1 // pred_region
      _
    $region17: #{tpu_custom_call.1} parent=1 // pred_fallthru
      _
    // Predicated region
    $region18: #{tpu_custom_call.1} parent=1 // pred_check
      _
    $region19: #{tpu_custom_call.1} parent=1 // pred_check_branch
      %22 = sbr.rel (0) target = $region21
    $region20: #{tpu_custom_call.1} parent=1 // pred_region
      _
    $region21: #{tpu_custom_call.1} parent=1 // pred_fallthru
      _
    // Predicated region
    $region22: #{tpu_custom_call.1} parent=1 // pred_check
      _
    $region23: #{tpu_custom_call.1} parent=1 // pred_check_branch
      %24 = sbr.rel (0) target = $region25
    $region24: #{tpu_custom_call.1} parent=1 // pred_region
      _
    $region25: #{tpu_custom_call.1} parent=1 // pred_fallthru
      _
    // Predicated region
    $region26: #{tpu_custom_call.1} parent=1 // pred_check
      _
    $region27: #{tpu_custom_call.1} parent=1 // pred_check_branch
      %26 = sbr.rel (0) target = $region29
    $region28: #{tpu_custom_call.1} parent=1 // pred_region
      _
    $region29: #{tpu_custom_call.1} parent=1 // pred_fallthru
      _
    %v28 = vld [vmem:[%s0] sm:$0xf]
    %v29 = vld [vmem:[%s1] sm:$0xf]
    %v30 = vld [vmem:[%s2] sm:$0x1]
    %v32 = vperm.slane %v30, 0
    %vm34 = vcmask 64512
    %v36 = vsel %vm34, %v28, 0
    %vm38 = vcmask 1043456
    %v40 = vsel %vm38, %v29, 0
    %42 = vmatpush.bf16.msra.mxu0 0
    %43 = vmatpush.bf16.msra.mxu0 0
    %44 = vmatpush.bf16.msra.mxu0 0
    %45 = vmatpush.bf16.msra.mxu0 0
    %46 = vmatpush.bf16.msra.mxu0 0
    %47 = vmatpush.bf16.msra.mxu0 0
    %48 = vmatpush.bf16.msra.mxu0 0
    %49 = vmatpush.bf16.msra.mxu0 %v40
    %50 = vmatmul.bf16.gmra.mxu0 %v36
    %v51 = vpop.f32.mrf.mxu0
    %v52 = vadd.f32 %v32, %v51
    %v53 = vpop.f32.mrf.mxu0
    %54 = vdwg.mxu0
    %v55 = vmax.f32 %v52, 0.0
    %v56 = vpack.c.bf16 %v55, %v55
    %v57 = vld [vmem:[%s3] sm:$0xf]
    %v58 = vld [vmem:[%s3 + $0x4] sm:$0xf]
    %v59 = vld [vmem:[%s3 + $0x8] sm:$0xf]
    %v60 = vld [vmem:[%s3 + $0xc] sm:$0xf]
    %v61 = vld [vmem:[%s3 + $0x10] sm:$0xf]
    %v62 = vld [vmem:[%s3 + $0x14] sm:$0xf]
    %v63 = vld [vmem:[%s3 + $0x18] sm:$0xf]
    %v64 = vld [vmem:[%s3 + $0x1c] sm:$0xf]
    %v65 = vld [vmem:[%s3 + $0x20] sm:$0xf]
    %v66 = vld [vmem:[%s3 + $0x24] sm:$0xf]
    %v67 = vld [vmem:[%s3 + $0x28] sm:$0xf]
    %v68 = vld [vmem:[%s3 + $0x2c] sm:$0xf]
    %v69 = vld [vmem:[%s3 + $0x30] sm:$0xf]
    %v70 = vld [vmem:[%s3 + $0x34] sm:$0xf]
    %v71 = vld [vmem:[%s3 + $0x38] sm:$0xf]
    %v72 = vld [vmem:[%s3 + $0x3c] sm:$0xf]
    %v73 = vld [vmem:[%s4] sm:$0x1]
    %v75 = vperm.slane %v73, 0
    %v93 = vunpack.c.l.b16 %v57
    %v94 = vunpack.c.l.b16 %v58
    %v95 = vunpack.c.l.b16 %v59
    %v96 = vunpack.c.l.b16 %v60
    %v97 = vunpack.c.l.b16 %v61
    %v98 = vunpack.c.l.b16 %v62
    %v99 = vunpack.c.l.b16 %v63
    %v100 = vunpack.c.l.b16 %v64
    %v101 = vunpack.c.l.b16 %v65
    %v102 = vunpack.c.l.b16 %v66
    %v103 = vunpack.c.l.b16 %v67
    %v104 = vunpack.c.l.b16 %v68
    %v105 = vunpack.c.l.b16 %v69
    %v106 = vunpack.c.l.b16 %v70
    %v107 = vunpack.c.l.b16 %v71
    %v108 = vunpack.c.l.b16 %v72
    %v109 = vpack.c.b16 %v94, %v93
    %v110 = vpack.c.b16 %v96, %v95
    %v111 = vpack.c.b16 %v98, %v97
    %v112 = vpack.c.b16 %v100, %v99
    %v113 = vpack.c.b16 %v102, %v101
    %v114 = vpack.c.b16 %v104, %v103
    %v115 = vpack.c.b16 %v106, %v105
    %v116 = vpack.c.b16 %v108, %v107
    %125 = vmatpush.bf16.msra.mxu0 %v116
    %126 = vmatpush.bf16.msra.mxu0 %v115
    %127 = vmatpush.bf16.msra.mxu0 %v114
    %128 = vmatpush.bf16.msra.mxu0 %v113
    %129 = vmatpush.bf16.msra.mxu0 %v112
    %130 = vmatpush.bf16.msra.mxu0 %v111
    %131 = vmatpush.bf16.msra.mxu0 %v110
    %132 = vmatpush.bf16.msra.mxu0 %v109
    %133 = vmatmul.bf16.gmra.mxu0 %v56
    %v134 = vpop.f32.mrf.mxu0
    %v135 = vadd.f32 %v75, %v134
    %v136 = vpop.f32.mrf.mxu0
    %137 = vdwg.mxu0
    %v138 = vmax.f32 %v135, 0.0
    %v139 = vpack.c.bf16 %v138, %v138
    %v140 = vld [vmem:[%s5] sm:$0xf]
    %v141 = vld [vmem:[%s5 + $0x4] sm:$0xf]
    %v142 = vld [vmem:[%s5 + $0x8] sm:$0xf]
    %v143 = vld [vmem:[%s5 + $0xc] sm:$0xf]
    %v144 = vld [vmem:[%s5 + $0x10] sm:$0xf]
    %v145 = vld [vmem:[%s5 + $0x14] sm:$0xf]
    %v146 = vld [vmem:[%s5 + $0x18] sm:$0xf]
    %v147 = vld [vmem:[%s5 + $0x1c] sm:$0xf]
    %v148 = vld [vmem:[%s5 + $0x20] sm:$0xf]
    %v149 = vld [vmem:[%s5 + $0x24] sm:$0xf]
    %v150 = vld [vmem:[%s5 + $0x28] sm:$0xf]
    %v151 = vld [vmem:[%s5 + $0x2c] sm:$0xf]
    %v152 = vld [vmem:[%s5 + $0x30] sm:$0xf]
    %v153 = vld [vmem:[%s5 + $0x34] sm:$0xf]
    %v154 = vld [vmem:[%s5 + $0x38] sm:$0xf]
    %v155 = vld [vmem:[%s5 + $0x3c] sm:$0xf]
    %v156 = vld [vmem:[%s6] sm:$0x1]
    %v158 = vperm.slane %v156, 0
    %v176 = vunpack.c.l.b16 %v140
    %v177 = vunpack.c.l.b16 %v141
    %v178 = vunpack.c.l.b16 %v142
    %v179 = vunpack.c.l.b16 %v143
    %v180 = vunpack.c.l.b16 %v144
    %v181 = vunpack.c.l.b16 %v145
    %v182 = vunpack.c.l.b16 %v146
    %v183 = vunpack.c.l.b16 %v147
    %v184 = vunpack.c.l.b16 %v148
    %v185 = vunpack.c.l.b16 %v149
    %v186 = vunpack.c.l.b16 %v150
    %v187 = vunpack.c.l.b16 %v151
    %v188 = vunpack.c.l.b16 %v152
    %v189 = vunpack.c.l.b16 %v153
    %v190 = vunpack.c.l.b16 %v154
    %v191 = vunpack.c.l.b16 %v155
    %v192 = vpack.c.b16 %v177, %v176
    %v193 = vpack.c.b16 %v179, %v178
    %v194 = vpack.c.b16 %v181, %v180
    %v195 = vpack.c.b16 %v183, %v182
    %v196 = vpack.c.b16 %v185, %v184
    %v197 = vpack.c.b16 %v187, %v186
    %v198 = vpack.c.b16 %v189, %v188
    %v199 = vpack.c.b16 %v191, %v190
    %208 = vmatpush.bf16.msra.mxu0 %v199
    %209 = vmatpush.bf16.msra.mxu0 %v198
    %210 = vmatpush.bf16.msra.mxu0 %v197
    %211 = vmatpush.bf16.msra.mxu0 %v196
    %212 = vmatpush.bf16.msra.mxu0 %v195
    %213 = vmatpush.bf16.msra.mxu0 %v194
    %214 = vmatpush.bf16.msra.mxu0 %v193
    %215 = vmatpush.bf16.msra.mxu0 %v192
    %216 = vmatmul.bf16.gmra.mxu0 %v139
    %v217 = vpop.f32.mrf.mxu0
    %v218 = vadd.f32 %v158, %v217
    %v219 = vpop.f32.mrf.mxu0
    %220 = vdwg.mxu0
    %vm221 = vcmask 343040
    %222 = vst.msk [vmem:[#allocation2] sm:$0xff] %vm221, %v218
    // Predicated region
    $region30: #{tpu_custom_call.1} parent=1 // pred_check
      _
    $region31: #{tpu_custom_call.1} parent=1 // pred_check_branch
      %224 = sbr.rel (0) target = $region33
    $region32: #{tpu_custom_call.1} parent=1 // pred_region
      %226 = vsyncadd [#allocation3], 0
      %s228 = sshll.u32 [#allocation2], 4
      %s229 = int_to_ptr.vmem [resolvable:$true] %s228
      %s230 = sshll.u32 %s7, 4
      %s231 = int_to_ptr.hbm [resolvable:$true] %s230
      %233 = dma.vmem_to_hbm [thread:$0]  %s229, 128, %s231, [#allocation3]
    $region33: #{tpu_custom_call.1} parent=1 // pred_fallthru
      _
    // Predicated region
    $region34: #{tpu_custom_call.1} parent=1 // pred_check
      _
    $region35: #{tpu_custom_call.1} parent=1 // pred_check_branch
      %235 = sbr.rel (0) target = $region37
    $region36: #{tpu_custom_call.1} parent=1 // pred_region
      %237 = dma.done [#allocation3], 128
    $region37: #{tpu_custom_call.1} parent=1 // pred_fallthru
      _
    %238 = vsyncpa [#allocation3], 1

</llo_original>
